<compile_context>
chip_gen: v7x
topology: tpu7x:2x2x1
jax: 0.10.0
libtpu: 0.0.40
codegen_flags: <defaults>
</compile_context>

<pallas_src>
import jax
import jax.numpy as jnp
from jax.experimental import pallas as pl
from jax.experimental.pallas import tpu as pltpu


# ----------------------------------------------------------------------------
# Primary path: direct HBM->HBM strided DMA (no VMEM staging, no grid).
# ----------------------------------------------------------------------------
def _cls_prepend_dma_kernel(cls_rows_hbm, feat_hbm, out_hbm, sem):
    # cls_rows_hbm: (B, 1, D)    CLS token, pre-cast + pre-broadcast in wrapper
    # feat_hbm:     (B, S, D)    input features (raw HBM ref)
    # out_hbm:      (B, S+1, D)  output (raw HBM ref)
    # sem:          (2,) DMA semaphores
    _, s, _ = feat_hbm.shape
    body_cp = pltpu.make_async_copy(feat_hbm, out_hbm.at[:, pl.ds(1, s), :], sem.at[0])
    head_cp = pltpu.make_async_copy(cls_rows_hbm, out_hbm.at[:, pl.ds(0, 1), :], sem.at[1])
    body_cp.start()
    head_cp.start()
    head_cp.wait()
    body_cp.wait()


def _prepend_cls_dma(cls_row, features):
    B, S, D = features.shape
    cls_rows = jnp.broadcast_to(cls_row.reshape(1, 1, D), (B, 1, D))
    return pl.pallas_call(
        _cls_prepend_dma_kernel,
        in_specs=[
            pl.BlockSpec(memory_space=pl.ANY),   # CLS rows, raw HBM
            pl.BlockSpec(memory_space=pl.ANY),   # features, raw HBM
        ],
        out_specs=pl.BlockSpec(memory_space=pl.ANY),
        out_shape=jax.ShapeDtypeStruct((B, S + 1, D), features.dtype),
        scratch_shapes=[pltpu.SemaphoreType.DMA((2,))],
    )(cls_rows, features)


# ----------------------------------------------------------------------------
# Fallback path: VMEM-staged BlockSpec pipeline (only used if DMA path fails).
# ----------------------------------------------------------------------------
def _cls_prepend_staged_kernel(cls_ref, feat_ref, out_ref):
    # cls_ref:  (1, D)       learnable CLS token, already in out dtype
    # feat_ref: (bt, S, D)   a tile of `bt` batch elements
    # out_ref:  (bt, S+1, D)
    bt, s_out, d = out_ref.shape
    s = s_out - 1
    out_ref[:, 0:1, :] = jnp.broadcast_to(cls_ref[...][None, :, :], (bt, 1, d))
    out_ref[:, pl.ds(1, s), :] = feat_ref[...]


def _pick_batch_tile(B, S, D, dtype, block_budget_bytes=8 * 1024 * 1024):
    """Batch tile whose *real* VMEM footprint (double-buffered + sublane-padded)
    stays within budget, while keeping >= 2 grid steps (v7x megacore)."""
    itemsize = jnp.dtype(dtype).itemsize
    pack = max(1, 32 // itemsize)                  # sublane pack: 8 f32 / 16 bf16 / 32 i8
    s_in = pl.cdiv(S, pack) * pack                 # padded input rows per batch elem
    s_out = pl.cdiv(S + 1, pack) * pack            # padded output rows per batch elem
    per_elem = 2 * (s_in + s_out) * D * itemsize   # x2: Pallas double-buffers both blocks
    bt = max(1, min(B, block_budget_bytes // max(per_elem, 1)))
    if B >= 2:
        bt = min(bt, pl.cdiv(B, 2))                # >= 2 grid steps so both v7x TCs work
    return bt


def _prepend_cls_staged(cls_row, features):
    B, S, D = features.shape
    bt = _pick_batch_tile(B, S, D, features.dtype)
    return pl.pallas_call(
        _cls_prepend_staged_kernel,
        grid=(pl.cdiv(B, bt),),                    # ragged last block is clipped (copy only)
        in_specs=[
            pl.BlockSpec((1, D), lambda b: (0, 0)),          # CLS token (shared)
            pl.BlockSpec((bt, S, D), lambda b: (b, 0, 0)),   # features tile
        ],
        out_specs=pl.BlockSpec((bt, S + 1, D), lambda b: (b, 0, 0)),
        out_shape=jax.ShapeDtypeStruct((B, S + 1, D), features.dtype),
        compiler_params=pltpu.CompilerParams(
            dimension_semantics=("parallel",),               # v7x: both TCs
            vmem_limit_bytes=48 * 1024 * 1024,               # safe on v7x, ample v5e/v6e
        ),
    )(cls_row, features)


# ----------------------------------------------------------------------------
# Wrapper: JAX/Pallas equivalent of LearnableClsToken.forward.
# ----------------------------------------------------------------------------
def learnable_cls_token(cls_param, features, mask, lengths):
    B, S, D = features.shape
    assert cls_param.shape == (D,)
    assert mask.shape == (B, S)
    assert lengths.shape == (B,)

    # Hoisted out of the kernel: dtype cast + (1, D) reshape of the CLS token.
    cls_row = cls_param.astype(features.dtype).reshape(1, D)

    try:
        feat_out = _prepend_cls_dma(cls_row, features)
    except Exception:
        # TODO(synk): drop this fallback once the HBM->HBM strided-DMA path is
        # verified on every target toolchain/generation.
        feat_out = _prepend_cls_staged(cls_row, features)

    # Mask / lengths bookkeeping stays outside the kernel (trivial bool/int32).
    mask_out = jnp.concatenate(
        [jnp.zeros((B, 1), dtype=jnp.bool_), mask.astype(jnp.bool_)], axis=1)
    len_out = lengths + 1
    return feat_out, mask_out, len_out


if __name__ == "__main__":
    # Small shapes consistent with the module; D kept a multiple of 128 so all
    # stores/DMA chunks are lane-dense.
    B, S, D = 2, 8, 128
    key = jax.random.PRNGKey(0)
    k_cls, k_feat, k_mask = jax.random.split(key, 3)

    # Module __init__ uses zeros(d_model); deterministic random values make the
    # "CLS row really lands at position 0" check non-trivial.
    cls_param = jax.random.normal(k_cls, (D,), dtype=jnp.float32)
    features = jax.random.normal(k_feat, (B, S, D), dtype=jnp.float32)
    mask = jax.random.bernoulli(k_mask, 0.3, (B, S))          # bool mask
    lengths = jnp.array([S, S - 2], dtype=jnp.int32)

    feat_out, mask_out, len_out = learnable_cls_token(cls_param, features, mask, lengths)
    jax.block_until_ready((feat_out, mask_out, len_out))

    # Pure-JAX reference (mirrors the PyTorch forward exactly).
    ref_feat = jnp.concatenate(
        [jnp.broadcast_to(cls_param[None, None, :], (B, 1, D)), features], axis=1)
    ref_mask = jnp.concatenate(
        [jnp.zeros((B, 1), dtype=jnp.bool_), mask], axis=1)
    ref_len = lengths + 1

    assert feat_out.shape == (B, S + 1, D) and feat_out.dtype == features.dtype
    assert mask_out.shape == (B, S + 1) and mask_out.dtype == jnp.bool_
    assert len_out.shape == (B,)
    assert jnp.allclose(feat_out, ref_feat)
    # The module's own assert (exact, since features/cls_param are both f32 here).
    assert bool(jnp.all(feat_out[0, 0, :] == cls_param.astype(features.dtype)))
    assert bool(jnp.all(mask_out == ref_mask))
    assert bool(jnp.all(len_out == ref_len))

    print("KERNEL_OK")
</pallas_src>

<mosaic_0001>
module attributes {stable_mosaic.version = 11 : i64} {
  func.func @_cls_prepend_dma_kernel(%arg0: memref<2x1x128xf32, #tpu.memory_space<any>>, %arg1: memref<2x8x128xf32, #tpu.memory_space<any>>, %arg2: memref<2x9x128xf32, #tpu.memory_space<any>>, %arg3: memref<2x!tpu.dma_semaphore, #tpu.memory_space<semaphore_mem>>) attributes {dimension_semantics = [], scalar_prefetch = 0 : i64, scratch_operands = 1 : i64, tpu.core_type = #tpu.core_type<tc>} {
    %c0_i32 = arith.constant 0 : i32
    %c0_i32_0 = arith.constant 0 : i32
    %c1_i32 = arith.constant 1 : i32
    %c0_i32_1 = arith.constant 0 : i32
    %0 = tpu.memref_slice %arg2[%c0_i32_0, %c1_i32, %c0_i32_1] : memref<2x9x128xf32, #tpu.memory_space<any>> -> memref<2x8x128xf32, #tpu.memory_space<any>>
    %1 = tpu.memref_slice %arg3[%c0_i32] : memref<2x!tpu.dma_semaphore, #tpu.memory_space<semaphore_mem>> -> memref<1x!tpu.dma_semaphore, #tpu.memory_space<semaphore_mem>>
    %2 = tpu.memref_squeeze %1 : memref<1x!tpu.dma_semaphore, #tpu.memory_space<semaphore_mem>> -> memref<!tpu.dma_semaphore, #tpu.memory_space<semaphore_mem>>
    tpu.enqueue_dma source(%arg1 : memref<2x8x128xf32, #tpu.memory_space<any>>) target(%0 : memref<2x8x128xf32, #tpu.memory_space<any>>) target_semaphore(%2 : memref<!tpu.dma_semaphore, #tpu.memory_space<semaphore_mem>>)
    %c1_i32_2 = arith.constant 1 : i32
    %c0_i32_3 = arith.constant 0 : i32
    %c0_i32_4 = arith.constant 0 : i32
    %c0_i32_5 = arith.constant 0 : i32
    %3 = tpu.memref_slice %arg2[%c0_i32_3, %c0_i32_4, %c0_i32_5] : memref<2x9x128xf32, #tpu.memory_space<any>> -> memref<2x1x128xf32, #tpu.memory_space<any>>
    %4 = tpu.memref_slice %arg3[%c1_i32_2] : memref<2x!tpu.dma_semaphore, #tpu.memory_space<semaphore_mem>> -> memref<1x!tpu.dma_semaphore, #tpu.memory_space<semaphore_mem>>
    %5 = tpu.memref_squeeze %4 : memref<1x!tpu.dma_semaphore, #tpu.memory_space<semaphore_mem>> -> memref<!tpu.dma_semaphore, #tpu.memory_space<semaphore_mem>>
    tpu.enqueue_dma source(%arg0 : memref<2x1x128xf32, #tpu.memory_space<any>>) target(%3 : memref<2x1x128xf32, #tpu.memory_space<any>>) target_semaphore(%5 : memref<!tpu.dma_semaphore, #tpu.memory_space<semaphore_mem>>)
    %c1_i32_6 = arith.constant 1 : i32
    %c0_i32_7 = arith.constant 0 : i32
    %c0_i32_8 = arith.constant 0 : i32
    %c0_i32_9 = arith.constant 0 : i32
    %6 = tpu.memref_slice %arg2[%c0_i32_7, %c0_i32_8, %c0_i32_9] : memref<2x9x128xf32, #tpu.memory_space<any>> -> memref<2x1x128xf32, #tpu.memory_space<any>>
    %7 = tpu.memref_slice %arg3[%c1_i32_6] : memref<2x!tpu.dma_semaphore, #tpu.memory_space<semaphore_mem>> -> memref<1x!tpu.dma_semaphore, #tpu.memory_space<semaphore_mem>>
    %8 = tpu.memref_squeeze %7 : memref<1x!tpu.dma_semaphore, #tpu.memory_space<semaphore_mem>> -> memref<!tpu.dma_semaphore, #tpu.memory_space<semaphore_mem>>
    tpu.wait_dma2 semaphore(%8 : memref<!tpu.dma_semaphore, #tpu.memory_space<semaphore_mem>>) src(%arg0 : memref<2x1x128xf32, #tpu.memory_space<any>>) dst(%6 : memref<2x1x128xf32, #tpu.memory_space<any>>)
    %c0_i32_10 = arith.constant 0 : i32
    %c0_i32_11 = arith.constant 0 : i32
    %c1_i32_12 = arith.constant 1 : i32
    %c0_i32_13 = arith.constant 0 : i32
    %9 = tpu.memref_slice %arg2[%c0_i32_11, %c1_i32_12, %c0_i32_13] : memref<2x9x128xf32, #tpu.memory_space<any>> -> memref<2x8x128xf32, #tpu.memory_space<any>>
    %10 = tpu.memref_slice %arg3[%c0_i32_10] : memref<2x!tpu.dma_semaphore, #tpu.memory_space<semaphore_mem>> -> memref<1x!tpu.dma_semaphore, #tpu.memory_space<semaphore_mem>>
    %11 = tpu.memref_squeeze %10 : memref<1x!tpu.dma_semaphore, #tpu.memory_space<semaphore_mem>> -> memref<!tpu.dma_semaphore, #tpu.memory_space<semaphore_mem>>
    tpu.wait_dma2 semaphore(%11 : memref<!tpu.dma_semaphore, #tpu.memory_space<semaphore_mem>>) src(%arg1 : memref<2x8x128xf32, #tpu.memory_space<any>>) dst(%9 : memref<2x8x128xf32, #tpu.memory_space<any>>)
    return
  }
}

module attributes {stable_mosaic.version = 11 : i64} {
  func.func @_cls_prepend_staged_kernel(%arg0: i32, %arg1: memref<1x128xf32, #tpu.memory_space<vmem>>, %arg2: memref<1x8x128xf32, #tpu.memory_space<vmem>>, %arg3: memref<1x9x128xf32, #tpu.memory_space<vmem>>) attributes {dimension_semantics = [#tpu.dimension_semantics<parallel>], iteration_bounds = array<i64: 2>, scalar_prefetch = 0 : i64, scratch_operands = 0 : i64, tpu.core_type = #tpu.core_type<tc>, window_params = [{pipeline_mode = #tpu.pipeline_mode<synchronous>, transform_indices = @transform_0, window_bounds = array<i64: 1, 128>}, {transform_indices = @transform_1, window_bounds = array<i64: 1, 8, 128>}, {transform_indices = @transform_2, window_bounds = array<i64: 1, 9, 128>}]} {
    %c0 = arith.constant 0 : index
    %c0_0 = arith.constant 0 : index
    %0 = vector.load %arg1[%c0, %c0_0] : memref<1x128xf32, #tpu.memory_space<vmem>>, vector<1x128xf32>
    %1 = vector.shape_cast %0 : vector<1x128xf32> to vector<1x1x128xf32>
    %c0_1 = arith.constant 0 : index
    %c0_2 = arith.constant 0 : index
    %c0_3 = arith.constant 0 : index
    %2 = vector.load %arg3[%c0_1, %c0_2, %c0_3] : memref<1x9x128xf32, #tpu.memory_space<vmem>>, vector<1x1x128xf32>
    tpu.vector_store %arg3[%c0_1, %c0_2, %c0_3], %1 {strides = array<i32>} : memref<1x9x128xf32, #tpu.memory_space<vmem>>, vector<1x1x128xf32>,
    %c0_4 = arith.constant 0 : index
    %c0_5 = arith.constant 0 : index
    %c0_6 = arith.constant 0 : index
    %3 = vector.load %arg2[%c0_4, %c0_5, %c0_6] : memref<1x8x128xf32, #tpu.memory_space<vmem>>, vector<1x8x128xf32>
    %c0_7 = arith.constant 0 : index
    %c1 = arith.constant 1 : index
    %c0_8 = arith.constant 0 : index
    %4 = vector.load %arg3[%c0_7, %c1, %c0_8] : memref<1x9x128xf32, #tpu.memory_space<vmem>>, vector<1x8x128xf32>
    tpu.vector_store %arg3[%c0_7, %c1, %c0_8], %3 {strides = array<i32>} : memref<1x9x128xf32, #tpu.memory_space<vmem>>, vector<1x8x128xf32>,
    return
  }
  func.func @transform_0(%arg0: i32) -> (i32, i32) {
    %c0_i32 = arith.constant 0 : i32
    %c0_i32_0 = arith.constant 0 : i32
    %c0_i32_1 = arith.constant 0 : i32
    return %c0_i32, %c0_i32_0 : i32, i32
  }
  func.func @transform_1(%arg0: i32) -> (i32, i32, i32) {
    %c0_i32 = arith.constant 0 : i32
    %c0_i32_0 = arith.constant 0 : i32
    %c0_i32_1 = arith.constant 0 : i32
    return %arg0, %c0_i32, %c0_i32_0 : i32, i32, i32
  }
  func.func @transform_2(%arg0: i32) -> (i32, i32, i32) {
    %c0_i32 = arith.constant 0 : i32
    %c0_i32_0 = arith.constant 0 : i32
    %c0_i32_1 = arith.constant 0 : i32
    return %arg0, %c0_i32, %c0_i32_0 : i32, i32, i32
  }
}

</mosaic_0001>

<llo_original>
// kernel: tpu_custom_call.1
$region0: #{tpu_custom_call.1}
  #allocation0 [shape = 'u32[]', space=smem, size = 0x4, offset = 0x4, fixed_abs, tag = 'smem constant byte address 0x4 - core index']
  #allocation1 [shape = 'u32[144,128]{1,0:T(1,128)}', space=vmem, size = 0x12000, scoped, tag = 'internal scratch']
  #allocation2 [shape = 's32[2]{0}', space=sflag, size = 0x8, scoped, tag = 'scratch operand']
  #allocation3 [shape = 's32[]', space=sflag, size = 0x4, offset = 0, fixed_abs, tag = 'sflag constant byte address 0x0 - dummy sync flag']
  #allocation4 [shape = 's32[]', space=sflag, size = 0x4, offset = 0, fixed_abs, tag = 'sflag constant byte address 0x0 - dummy sync flag']
  %s0 = inlined_call_operand.hbm [shape: f32[2,1,128], index: 0, kind: input, shape index: {}]
  %s1 = inlined_call_operand.hbm [shape: f32[2,8,128], index: 1, kind: input, shape index: {}]
  %s2 = inlined_call_operand.vmem [shape: f32[2,9,128], index: 2, kind: output, shape index: {}]
  %s3 = sld [smem:[#allocation0]]
  $region2: #{tpu_custom_call.1} parent=0
    _
  %s5 = ssub.s32 1, %s3
  %s6 = scalar_select 0, %s5, %s3
  %s7 = scalar_lea.vmem %s2, 1
  %s9 = sshll.u32 %s7, 4
  %s10 = int_to_ptr.vmem [resolvable:$true] %s9
  %12 = dma.hbm_to_vmem [thread:$0]  %s1, 256, %s10, [#allocation2], 128, 256, 8
  %s13 = scalar_lea.sflag [#allocation2], 1
  %s15 = sshll.u32 %s2, 4
  %s16 = int_to_ptr.vmem [resolvable:$true] %s15
  %18 = dma.hbm_to_vmem [thread:$0]  %s0, 32, %s16, %s13, 16, 256, 1
  %s19 = smul.u32 2, 1
  %s20 = smul.u32 %s19, 1
  %s21 = sshll.u32 %s20, 4
  %22 = dma.done %s13, %s21
  %s23 = smul.u32 2, 8
  %s24 = smul.u32 %s23, 1
  %s25 = sshll.u32 %s24, 4
  %26 = dma.done [#allocation2], %s25
  %27 = vsyncmov [#allocation2]
  %s28 = vpop.sfrf %27
  %p29 = scmp.eq.s32.totalorder %s28, 0
  %p30 = pneg %p29
  %32 = shalt.err (%p30)
  %s33 = scalar_lea.sflag [#allocation2], 1
  %34 = vsyncmov %s33
  %s35 = vpop.sfrf %34
  %p36 = scmp.eq.s32.totalorder %s35, 0
  %p37 = pneg %p36
  %39 = shalt.err (%p37)

// kernel: tpu_custom_call.1
$region0: #{tpu_custom_call.1}
  #allocation0 [shape = 'u32[]', space=smem, size = 0x4, offset = 0x4, fixed_abs, tag = 'smem constant byte address 0x4 - core index']
  #allocation1 [shape = 'u32[144,128]{1,0:T(1,128)}', space=vmem, size = 0x12000, scoped, tag = 'internal scratch']
  %s0 = inlined_call_operand.hbm [shape: f32[1,128], index: 0, kind: input, shape index: {}]
  %s1 = inlined_call_operand.hbm [shape: f32[2,8,128], index: 1, kind: input, shape index: {}]
  %s2 = inlined_call_operand.vmem [shape: f32[2,9,128], index: 2, kind: output, shape index: {}]
  %s3 = sld [smem:[#allocation0]]
  $region49: #{tpu_custom_call.1} parent=0
    _
  %s5 = ssub.s32 1, %s3
  %s6 = scalar_select 0, %s5, %s3
  $region1: #{tpu_custom_call.1} parent=0
    #allocation2 [shape = 'u8[512]{0}', space=vmem, size = 0x400, scoped, tag = 'input window, operand 0, single buffered']
    #allocation3 [shape = 's32[2]{0}', space=sflag, size = 0x8, scoped, tag = 'scoped memory for tpu_custom_call.1']
    #allocation4 [shape = 'u8[8192]{0}', space=vmem, size = 0x2000, scoped, tag = 'input window, operand 1']
    #allocation5 [shape = 's32[2]{0}', space=sflag, size = 0x8, scoped, tag = 'scoped memory for tpu_custom_call.1']
    %7 = vsyncpa [#allocation3], 0
    %8 = vsyncpa [#allocation5], 0
    %s9 = scalar_lea.sflag [#allocation5], 1
    %10 = vsyncpa %s9, 0
    loop: start=0, step=1, limit=4
    $region2: #{tpu_custom_call.1} parent=1 // loop_pre_header
      _
    $region3: #{tpu_custom_call.1} parent=1 // loop_header
      %s12 = sphi 0, %s16
      %p13 = scmp.ge.s32.totalorder %s12, 4
      %s20 = sphi 0, %s20
      %s22 = sphi 0, %s20
      %s23 = sphi 0, %s22
      %s37 = sphi 0, %s23
      %s43 = sphi 0, %s45
      %s46 = sphi 0, %s43
      %s47 = sphi 0, %s46
      %s63 = sphi 0, %s47
      %s69 = sphi 0, %s71
      %s72 = sphi 0, %s69
      %s73 = sphi 0, %s72
      %s89 = sphi 0, %s73
    $region4: #{tpu_custom_call.1} parent=1 // loop_header_branch
      %15 = sbr.rel (%p13) target = $region8
    $region5: #{tpu_custom_call.1} parent=1 // loop_body
      %s17 = ssub.s32 %s12, 1
      %s18 = ssub.s32 %s12, 2
      %s19 = sadd.s32 %s12, 1
      %s21 = sadd.s32 %s20, 1
      %p24 = scmp.eq.s32.totalorder %s12, 1
      %p25 = scmp.ne.s32.totalorder %s20, %s22
      %p26 = scmp.eq.s32.totalorder %s12, 0
      %p27 = por %p25, %p26
      %p28 = scmp.ne.s32.totalorder %s20, %s22
      %p29 = scmp.eq.s32.totalorder %s17, 1
      %p30 = por %p28, %p29
      %p31 = scmp.ne.s32.totalorder %s22, %s23
      %p32 = scmp.eq.s32.totalorder %s17, 0
      %p33 = por %p31, %p32
      %p34 = scmp.ne.s32.totalorder %s22, %s23
      %p35 = scmp.eq.s32.totalorder %s18, 1
      %p36 = por %p34, %p35
      %p38 = scmp.ne.s32.totalorder %s23, %s37
      %p39 = scmp.eq.s32.totalorder %s18, 0
      %p40 = por %p38, %p39
      %s41 = ssub.s32 %s12, %s19
      %p42 = scmp.eq.s32.totalorder %s41, 0
      %s44 = sadd.s32 %s43, 1
      %s45 = scalar_select %p42, %s43, %s44
      %p48 = pneg %p42
      %p49 = scmp.eq.s32.totalorder %s12, 1
      %p50 = por %p48, %p49
      %p51 = scmp.ne.s32.totalorder %s43, %s46
      %p52 = scmp.eq.s32.totalorder %s12, 0
      %p53 = por %p51, %p52
      %p54 = scmp.ne.s32.totalorder %s43, %s46
      %p55 = scmp.eq.s32.totalorder %s17, 1
      %p56 = por %p54, %p55
      %p57 = scmp.ne.s32.totalorder %s46, %s47
      %p58 = scmp.eq.s32.totalorder %s17, 0
      %p59 = por %p57, %p58
      %p60 = scmp.ne.s32.totalorder %s46, %s47
      %p61 = scmp.eq.s32.totalorder %s18, 1
      %p62 = por %p60, %p61
      %p64 = scmp.ne.s32.totalorder %s47, %s63
      %p65 = scmp.eq.s32.totalorder %s18, 0
      %p66 = por %p64, %p65
      %s67 = ssub.s32 %s12, %s19
      %p68 = scmp.eq.s32.totalorder %s67, 0
      %s70 = sadd.s32 %s69, 1
      %s71 = scalar_select %p68, %s69, %s70
      %p74 = pneg %p68
      %p75 = scmp.eq.s32.totalorder %s12, 1
      %p76 = por %p74, %p75
      %p77 = scmp.ne.s32.totalorder %s69, %s72
      %p78 = scmp.eq.s32.totalorder %s12, 0
      %p79 = por %p77, %p78
      %p80 = scmp.ne.s32.totalorder %s69, %s72
      %p81 = scmp.eq.s32.totalorder %s17, 1
      %p82 = por %p80, %p81
      %p83 = scmp.ne.s32.totalorder %s72, %s73
      %p84 = scmp.eq.s32.totalorder %s17, 0
      %p85 = por %p83, %p84
      %p86 = scmp.ne.s32.totalorder %s72, %s73
      %p87 = scmp.eq.s32.totalorder %s18, 1
      %p88 = por %p86, %p87
      %p90 = scmp.ne.s32.totalorder %s73, %s89
      %p91 = scmp.eq.s32.totalorder %s18, 0
      %p92 = por %p90, %p91
      %p93 = scmp.le.s32.totalorder 1, %s12
      %p94 = scmp.lt.s32.totalorder %s12, 3
      %p95 = pnand %p93, %p94
      %p96 = pneg %p95
      // Predicated region
      $region9: #{tpu_custom_call.1} parent=5 // pred_check
        _
      $region10: #{tpu_custom_call.1} parent=5 // pred_check_branch
        %98 = sbr.rel (%p95) target = $region12
      $region11: #{tpu_custom_call.1} parent=5 // pred_region
        %s99 = ssub.s32 %s12, 1
        // Predicated region
        $region13: #{tpu_custom_call.1} parent=11 // pred_check
          %p100 = pneg %p33
        $region14: #{tpu_custom_call.1} parent=11 // pred_check_branch
          %102 = sbr.rel (%p100) target = $region16
        $region15: #{tpu_custom_call.1} parent=11 // pred_region
          %s104 = ssub.s32 16, 16
          %105 = vsyncadd [#allocation3], %s104
          %s107 = sshll.u32 [#allocation2], 4
          %s108 = int_to_ptr.vmem [resolvable:$true] %s107
          %110 = dma.hbm_to_vmem [thread:$0]  %s0, 16, %s108, [#allocation3]
        $region16: #{tpu_custom_call.1} parent=11 // pred_fallthru
          _
      $region12: #{tpu_custom_call.1} parent=5 // pred_fallthru
        _
      %p111 = scmp.lt.s32.totalorder %s12, 2
      // Predicated region
      $region17: #{tpu_custom_call.1} parent=5 // pred_check
        %p112 = pneg %p111
      $region18: #{tpu_custom_call.1} parent=5 // pred_check_branch
        %114 = sbr.rel (%p112) target = $region20
      $region19: #{tpu_custom_call.1} parent=5 // pred_region
        // Predicated region
        $region21: #{tpu_custom_call.1} parent=19 // pred_check
          %p115 = pneg %p53
        $region22: #{tpu_custom_call.1} parent=19 // pred_check_branch
          %117 = sbr.rel (%p115) target = $region24
        $region23: #{tpu_custom_call.1} parent=19 // pred_region
          %s118 = sand.u32 %s43, 1
          %s119 = scalar_lea.sflag [#allocation5], %s118
          %s120 = sand.u32 %s43, 1
          %s121 = smul.addr %s120, 8
          %s122 = scalar_lea.vmem [#allocation4], %s121
          %s124 = ssub.s32 128, 128
          %125 = vsyncadd %s119, %s124
          %s126 = smul.addr %s12, 128
          %s127 = scalar_lea.hbm %s1, %s126
          %s129 = sshll.u32 %s122, 4
          %s130 = int_to_ptr.vmem [resolvable:$true] %s129
          %132 = dma.hbm_to_vmem [thread:$0]  %s127, 128, %s130, %s119
        $region24: #{tpu_custom_call.1} parent=19 // pred_fallthru
          _
      $region20: #{tpu_custom_call.1} parent=5 // pred_fallthru
        _
      %p133 = scmp.le.s32.totalorder 1, %s12
      %p134 = scmp.lt.s32.totalorder %s12, 3
      %p135 = pnand %p133, %p134
      %p136 = pneg %p135
      // Predicated region
      $region25: #{tpu_custom_call.1} parent=5 // pred_check
        _
      $region26: #{tpu_custom_call.1} parent=5 // pred_check_branch
        %138 = sbr.rel (%p135) target = $region28
      $region27: #{tpu_custom_call.1} parent=5 // pred_region
        %s139 = ssub.s32 %s12, 1
        // Predicated region
        $region29: #{tpu_custom_call.1} parent=27 // pred_check
          %p140 = pneg %p33
        $region30: #{tpu_custom_call.1} parent=27 // pred_check_branch
          %142 = sbr.rel (%p140) target = $region32
        $region31: #{tpu_custom_call.1} parent=27 // pred_region
          %143 = dma.done [#allocation3], 16
        $region32: #{tpu_custom_call.1} parent=27 // pred_fallthru
          _
        %s144 = sand.u32 %s46, 1
        %s145 = scalar_lea.sflag [#allocation5], %s144
        %s146 = sand.u32 %s46, 1
        %s147 = smul.addr %s146, 8
        %s148 = scalar_lea.vmem [#allocation4], %s147
        // Predicated region
        $region33: #{tpu_custom_call.1} parent=27 // pred_check
          %p149 = pneg %p59
        $region34: #{tpu_custom_call.1} parent=27 // pred_check_branch
          %151 = sbr.rel (%p149) target = $region36
        $region35: #{tpu_custom_call.1} parent=27 // pred_region
          %152 = dma.done %s145, 128
        $region36: #{tpu_custom_call.1} parent=27 // pred_fallthru
          _
        %p153 = pneg %p33
        %p154 = pneg %p30
        %s155 = sand.u32 %s46, 1
        %s156 = scalar_lea.sflag [#allocation5], %s155
        %s157 = sand.u32 %s46, 1
        %s158 = smul.addr %s157, 8
        %s159 = scalar_lea.vmem [#allocation4], %s158
        %p160 = pneg %p59
        %p161 = pneg %p56
        %p162 = pneg %p85
        %p163 = pneg %p82
        %p164 = scmp.lt.s32.totalorder %s17, 1
        %s165 = scalar_select %p164, %s17, 1
        %s166 = smul.addr %s165, 2
        %s167 = smul.addr %s166, 8
        %s168 = scalar_lea.vmem %s2, %s167
        %p169 = scmp.lt.s32.totalorder %s17, 1
        %s170 = scalar_select %p169, %s17, 1
        %s171 = smul.addr %s170, 2
        %s172 = smul.addr %s171, 8
        %s173 = scalar_lea.vmem %s2, %s172
        %v174 = vld [vmem:[#allocation2] sm:$0x1]
        %175 = vst [vmem:[%s173] sm:$0x1] %v174
        %v176 = vld [vmem:[%s148] sm:$0xff]
        %177 = vst [vmem:[%s173 + $0x1] sm:$0xff] %v176
        %p178 = scmp.lt.s32.totalorder %s17, 1
        %s179 = scalar_select %p178, %s17, 1
        %s180 = smul.addr %s179, 2
        %s181 = smul.addr %s180, 8
        %s182 = scalar_lea.vmem %s2, %s181
        // Predicated region
        $region37: #{tpu_custom_call.1} parent=27 // pred_check
          %p183 = pneg %p82
        $region38: #{tpu_custom_call.1} parent=27 // pred_check_branch
          %185 = sbr.rel (%p183) target = $region40
        $region39: #{tpu_custom_call.1} parent=27 // pred_region
          _
        $region40: #{tpu_custom_call.1} parent=27 // pred_fallthru
          _
      $region28: #{tpu_custom_call.1} parent=5 // pred_fallthru
        _
      %p186 = scmp.le.s32.totalorder 2, %s12
      // Predicated region
      $region41: #{tpu_custom_call.1} parent=5 // pred_check
        %p187 = pneg %p186
      $region42: #{tpu_custom_call.1} parent=5 // pred_check_branch
        %189 = sbr.rel (%p187) target = $region44
      $region43: #{tpu_custom_call.1} parent=5 // pred_region
        %s190 = ssub.s32 %s12, 2
        // Predicated region
        $region45: #{tpu_custom_call.1} parent=43 // pred_check
          %p191 = pneg %p88
        $region46: #{tpu_custom_call.1} parent=43 // pred_check_branch
          %193 = sbr.rel (%p191) target = $region48
        $region47: #{tpu_custom_call.1} parent=43 // pred_region
          %p194 = scmp.lt.s32.totalorder %s18, 1
          %s195 = scalar_select %p194, %s18, 1
          %s196 = smul.addr %s195, 2
          %s197 = smul.addr %s196, 8
          %s198 = scalar_lea.vmem %s2, %s197
        $region48: #{tpu_custom_call.1} parent=43 // pred_fallthru
          _
      $region44: #{tpu_custom_call.1} parent=5 // pred_fallthru
        _
    $region6: #{tpu_custom_call.1} parent=1 // loop_footer
      %s16 = sadd.s32 1, %s12
    $region7: #{tpu_custom_call.1} parent=1 // loop_footer_branch
      %11 = sbr.rel target = $region3
    $region8: #{tpu_custom_call.1} parent=1 // loop_exit
      _
    %199 = vsyncpa [#allocation3], 1
    %s200 = scalar_lea.sflag [#allocation3], 1
    %201 = vsyncpa %s200, 1
    %202 = vsyncpa [#allocation5], 1
    %s203 = scalar_lea.sflag [#allocation5], 1
    %204 = vsyncpa %s203, 1

</llo_original>
